<compile_context>
chip_gen: v5e
topology: v5e:2x2
jax: 0.10.0
libtpu: 0.0.40
codegen_flags: <defaults>
</compile_context>

<pallas_src>
from functools import partial

import jax
import jax.numpy as jnp
from jax import lax
from jax.experimental import pallas as pl
from jax.experimental.pallas import tpu as pltpu


def mlp_kernel(x_ref, w1_ref, b1_ref, w2_ref, b2_ref, w3_ref, b3_ref, o_ref):
    # x_ref : (TB, 8)  natural-layout batch tile
    # w1_ref: (64, 8), b1_ref: (64, 1)   (pre-scaled / pre-folded, see wrapper)
    # w2_ref: (16, 64), b2_ref: (16, 1)
    # w3_ref: (1, 16),  b3_ref: (1, 1)
    # o_ref : (1, TB)  lane-dense output row
    #
    # Layer 1 contracts x's feature dim directly (A @ Bᵀ form) so the batch
    # lands on the lane axis without a host-side transpose pass.
    t1 = jnp.tanh(
        lax.dot_general(
            w1_ref[...], x_ref[...],
            dimension_numbers=(((1,), (1,)), ((), ())),
            preferred_element_type=jnp.float32)
        + b1_ref[...])                                            # (64, TB)
    t2 = jnp.tanh(
        jnp.dot(w2_ref[...], t1, preferred_element_type=jnp.float32)
        + b2_ref[...])                                            # (16, TB)
    t3 = jnp.tanh(
        jnp.dot(w3_ref[...], t2, preferred_element_type=jnp.float32)
        + b3_ref[...])                                            # (1, TB)
    # Only the final output keeps the sigmoid affine.
    o_ref[...] = (0.5 * t3 + 0.5).astype(o_ref.dtype)


def _round_up(n, m):
    return ((n + m - 1) // m) * m


def _pad_to(a, shape):
    out = jnp.zeros(shape, a.dtype)
    return out.at[: a.shape[0], : a.shape[1]].set(a)


def _select_tiling(batch, tb_max):
    """Pick (TB, grid) so padding waste is bounded and grid >= 2 when possible."""
    cols = _round_up(batch, 128)          # lane-padded batch columns
    m = cols // 128                       # number of 128-wide column groups
    n_tiles = pl.cdiv(cols, tb_max)       # tiles needed to respect tb_max
    if m >= 2:
        # >= 2 grid steps so the "parallel" batch axis shards across both
        # TensorCores on v7x (and re-enables DMA/compute pipelining).
        n_tiles = max(n_tiles, 2)
    tb = pl.cdiv(m, n_tiles) * 128
    grid = pl.cdiv(m, tb // 128)
    return tb, grid


@partial(jax.jit, static_argnames=("tb_max",))
def mlp_forward(x, params, *, tb_max=4096):
    """x: (B, 8) f32. Returns (B, 1) f32."""
    w1, b1, w2, b2, w3, b3 = params
    B = x.shape[0]
    TB, grid = _select_tiling(B, tb_max)
    B_pad = grid * TB

    # Fold sigmoid(z) = 0.5*tanh(0.5*z) + 0.5 into the weights:
    #   t1 = tanh(x @ (0.5 W1) + 0.5 b1)
    #   t2 = tanh(t1 @ (0.25 W2) + 0.25*colsum(W2) + 0.5 b2)
    #   t3 = tanh(t2 @ (0.25 W3) + 0.25*colsum(W3) + 0.5 b3)
    #   y  = 0.5 t3 + 0.5
    # Zero padding keeps this exact: padded t-rows are tanh(0)=0 and multiply
    # zero-padded downstream weight columns.
    w1t = _pad_to((0.5 * w1).T, (64, 8))
    b1c = _pad_to((0.5 * b1).reshape(-1, 1), (64, 1))
    w2t = _pad_to((0.25 * w2).T, (16, 64))
    b2c = _pad_to(
        (0.25 * jnp.sum(w2, axis=0) + 0.5 * b2.reshape(-1)).reshape(-1, 1),
        (16, 1))
    w3t = _pad_to((0.25 * w3).T, (1, 16))
    b3c = (0.25 * jnp.sum(w3, axis=0) + 0.5 * b3.reshape(-1)).reshape(1, 1)

    # Natural-layout, zero-padded x (cheap contiguous pad; no transpose pass).
    x_pad = jnp.zeros((B_pad, 8), jnp.float32).at[:B, :].set(x)

    resident = lambda a: pl.BlockSpec(a.shape, lambda i: (0, 0))

    yT = pl.pallas_call(
        mlp_kernel,
        out_shape=jax.ShapeDtypeStruct((1, B_pad), jnp.float32),
        grid=(grid,),
        in_specs=[
            pl.BlockSpec((TB, 8), lambda i: (i, 0)),   # x tile, pipelined
            resident(w1t), resident(b1c),
            resident(w2t), resident(b2c),
            resident(w3t), resident(b3c),
        ],
        out_specs=pl.BlockSpec((1, TB), lambda i: (0, i)),
        compiler_params=pltpu.CompilerParams(
            dimension_semantics=("parallel",),
            vmem_limit_bytes=32 * 1024 * 1024),
    )(x_pad, w1t, b1c, w2t, b2c, w3t, b3c)

    return yT[:, :B].T  # (B, 1)


def init_params(key):
    """Deterministic init mimicking PyTorch's default Linear init."""
    dims = [(8, 60), (60, 14), (14, 1)]
    params = []
    for fan_in, fan_out in dims:
        kw, kb, key = jax.random.split(key, 3)
        bound = 1.0 / jnp.sqrt(float(fan_in))
        w = jax.random.uniform(kw, (fan_in, fan_out), jnp.float32, -bound, bound)
        b = jax.random.uniform(kb, (1, fan_out), jnp.float32, -bound, bound)
        params += [w, b]
    return tuple(params)


def reference_forward(x, params):
    w1, b1, w2, b2, w3, b3 = params
    h1 = jax.nn.sigmoid(x @ w1 + b1)
    h2 = jax.nn.sigmoid(h1 @ w2 + b2)
    return jax.nn.sigmoid(h2 @ w3 + b3)


if __name__ == "__main__":
    key = jax.random.PRNGKey(0)
    kx, kp, kx2 = jax.random.split(key, 3)
    params = init_params(kp)

    # Small primary check (single tile).
    batch = 16
    x = jax.random.normal(kx, (batch, 8), jnp.float32)
    y = mlp_forward(x, params)
    jax.block_until_ready(y)
    y_ref = reference_forward(x, params)
    assert y.shape == (batch, 1)
    assert jnp.allclose(y, y_ref, atol=2e-5, rtol=1e-4)

    # Multi-tile / megacore-split / ragged-batch check (grid of 2 tiles of 256,
    # last tile zero-padded).
    batch2 = 300
    x2 = jax.random.normal(kx2, (batch2, 8), jnp.float32)
    y2 = mlp_forward(x2, params)
    jax.block_until_ready(y2)
    y2_ref = reference_forward(x2, params)
    assert y2.shape == (batch2, 1)
    assert jnp.allclose(y2, y2_ref, atol=2e-5, rtol=1e-4)

    print("KERNEL_OK")
</pallas_src>

<mosaic_0001>
module attributes {stable_mosaic.version = 11 : i64} {
  func.func @mlp_kernel(%arg0: i32, %arg1: memref<128x8xf32, #tpu.memory_space<vmem>>, %arg2: memref<64x8xf32, #tpu.memory_space<vmem>>, %arg3: memref<64x1xf32, #tpu.memory_space<vmem>>, %arg4: memref<16x64xf32, #tpu.memory_space<vmem>>, %arg5: memref<16x1xf32, #tpu.memory_space<vmem>>, %arg6: memref<1x16xf32, #tpu.memory_space<vmem>>, %arg7: memref<1x1xf32, #tpu.memory_space<vmem>>, %arg8: memref<1x128xf32, #tpu.memory_space<vmem>>) attributes {dimension_semantics = [#tpu.dimension_semantics<parallel>], iteration_bounds = array<i64: 1>, scalar_prefetch = 0 : i64, scratch_operands = 0 : i64, tpu.core_type = #tpu.core_type<tc>, window_params = [{transform_indices = @transform_0, window_bounds = array<i64: 128, 8>}, {pipeline_mode = #tpu.pipeline_mode<synchronous>, transform_indices = @transform_1, window_bounds = array<i64: 64, 8>}, {pipeline_mode = #tpu.pipeline_mode<synchronous>, transform_indices = @transform_2, window_bounds = array<i64: 64, 1>}, {pipeline_mode = #tpu.pipeline_mode<synchronous>, transform_indices = @transform_3, window_bounds = array<i64: 16, 64>}, {pipeline_mode = #tpu.pipeline_mode<synchronous>, transform_indices = @transform_4, window_bounds = array<i64: 16, 1>}, {pipeline_mode = #tpu.pipeline_mode<synchronous>, transform_indices = @transform_5, window_bounds = array<i64: 1, 16>}, {pipeline_mode = #tpu.pipeline_mode<synchronous>, transform_indices = @transform_6, window_bounds = array<i64: 1, 1>}, {transform_indices = @transform_7, window_bounds = array<i64: 1, 128>}]} {
    %c0 = arith.constant 0 : index
    %c0_0 = arith.constant 0 : index
    %0 = vector.load %arg2[%c0, %c0_0] : memref<64x8xf32, #tpu.memory_space<vmem>>, vector<64x8xf32>
    %c0_1 = arith.constant 0 : index
    %c0_2 = arith.constant 0 : index
    %1 = vector.load %arg1[%c0_1, %c0_2] : memref<128x8xf32, #tpu.memory_space<vmem>>, vector<128x8xf32>
    %cst = arith.constant dense<0.000000e+00> : vector<64x128xf32>
    %2 = tpu.matmul %0, %1, %cst {dimension_numbers = #tpu.dot_dimension_numbers<[1], [1], [0], [0], [0, 0, 1, 0], [], []>} : vector<64x8xf32>, vector<128x8xf32>, vector<64x128xf32> -> vector<64x128xf32>
    %c0_3 = arith.constant 0 : index
    %c0_4 = arith.constant 0 : index
    %3 = vector.load %arg3[%c0_3, %c0_4] : memref<64x1xf32, #tpu.memory_space<vmem>>, vector<64x1xf32>
    %4 = vector.broadcast %3 : vector<64x1xf32> to vector<64x128xf32>
    %5 = arith.addf %2, %4 : vector<64x128xf32>
    %6 = math.tanh %5 : vector<64x128xf32>
    %c0_5 = arith.constant 0 : index
    %c0_6 = arith.constant 0 : index
    %7 = vector.load %arg4[%c0_5, %c0_6] : memref<16x64xf32, #tpu.memory_space<vmem>>, vector<16x64xf32>
    %cst_7 = arith.constant dense<0.000000e+00> : vector<16x128xf32>
    %8 = tpu.matmul %7, %6, %cst_7 {dimension_numbers = #tpu.dot_dimension_numbers<[1], [0], [0], [1], [0, 0, 1, 1], [], []>} : vector<16x64xf32>, vector<64x128xf32>, vector<16x128xf32> -> vector<16x128xf32>
    %c0_8 = arith.constant 0 : index
    %c0_9 = arith.constant 0 : index
    %9 = vector.load %arg5[%c0_8, %c0_9] : memref<16x1xf32, #tpu.memory_space<vmem>>, vector<16x1xf32>
    %10 = vector.broadcast %9 : vector<16x1xf32> to vector<16x128xf32>
    %11 = arith.addf %8, %10 : vector<16x128xf32>
    %12 = math.tanh %11 : vector<16x128xf32>
    %c0_10 = arith.constant 0 : index
    %c0_11 = arith.constant 0 : index
    %13 = vector.load %arg6[%c0_10, %c0_11] : memref<1x16xf32, #tpu.memory_space<vmem>>, vector<1x16xf32>
    %cst_12 = arith.constant dense<0.000000e+00> : vector<1x128xf32>
    %14 = tpu.matmul %13, %12, %cst_12 {dimension_numbers = #tpu.dot_dimension_numbers<[1], [0], [0], [1], [0, 0, 1, 1], [], []>} : vector<1x16xf32>, vector<16x128xf32>, vector<1x128xf32> -> vector<1x128xf32>
    %c0_13 = arith.constant 0 : index
    %c0_14 = arith.constant 0 : index
    %15 = vector.load %arg7[%c0_13, %c0_14] : memref<1x1xf32, #tpu.memory_space<vmem>>, vector<1x1xf32>
    %16 = vector.broadcast %15 : vector<1x1xf32> to vector<1x128xf32>
    %17 = arith.addf %14, %16 : vector<1x128xf32>
    %18 = math.tanh %17 : vector<1x128xf32>
    %cst_15 = arith.constant 5.000000e-01 : f32
    %19 = vector.broadcast %cst_15 : f32 to vector<1x128xf32>
    %20 = arith.mulf %19, %18 : vector<1x128xf32>
    %cst_16 = arith.constant 5.000000e-01 : f32
    %21 = vector.broadcast %cst_16 : f32 to vector<1x128xf32>
    %22 = arith.addf %20, %21 : vector<1x128xf32>
    %c0_17 = arith.constant 0 : index
    %c0_18 = arith.constant 0 : index
    %23 = vector.load %arg8[%c0_17, %c0_18] : memref<1x128xf32, #tpu.memory_space<vmem>>, vector<1x128xf32>
    tpu.vector_store %arg8[%c0_17, %c0_18], %22 {strides = array<i32>} : memref<1x128xf32, #tpu.memory_space<vmem>>, vector<1x128xf32>,
    return
  }
  func.func @transform_0(%arg0: i32) -> (i32, i32) {
    %c0_i32 = arith.constant 0 : i32
    %c0_i32_0 = arith.constant 0 : i32
    return %arg0, %c0_i32 : i32, i32
  }
  func.func @transform_1(%arg0: i32) -> (i32, i32) {
    %c0_i32 = arith.constant 0 : i32
    %c0_i32_0 = arith.constant 0 : i32
    %c0_i32_1 = arith.constant 0 : i32
    return %c0_i32, %c0_i32_0 : i32, i32
  }
  func.func @transform_2(%arg0: i32) -> (i32, i32) {
    %c0_i32 = arith.constant 0 : i32
    %c0_i32_0 = arith.constant 0 : i32
    %c0_i32_1 = arith.constant 0 : i32
    return %c0_i32, %c0_i32_0 : i32, i32
  }
  func.func @transform_3(%arg0: i32) -> (i32, i32) {
    %c0_i32 = arith.constant 0 : i32
    %c0_i32_0 = arith.constant 0 : i32
    %c0_i32_1 = arith.constant 0 : i32
    return %c0_i32, %c0_i32_0 : i32, i32
  }
  func.func @transform_4(%arg0: i32) -> (i32, i32) {
    %c0_i32 = arith.constant 0 : i32
    %c0_i32_0 = arith.constant 0 : i32
    %c0_i32_1 = arith.constant 0 : i32
    return %c0_i32, %c0_i32_0 : i32, i32
  }
  func.func @transform_5(%arg0: i32) -> (i32, i32) {
    %c0_i32 = arith.constant 0 : i32
    %c0_i32_0 = arith.constant 0 : i32
    %c0_i32_1 = arith.constant 0 : i32
    return %c0_i32, %c0_i32_0 : i32, i32
  }
  func.func @transform_6(%arg0: i32) -> (i32, i32) {
    %c0_i32 = arith.constant 0 : i32
    %c0_i32_0 = arith.constant 0 : i32
    %c0_i32_1 = arith.constant 0 : i32
    return %c0_i32, %c0_i32_0 : i32, i32
  }
  func.func @transform_7(%arg0: i32) -> (i32, i32) {
    %c0_i32 = arith.constant 0 : i32
    %c0_i32_0 = arith.constant 0 : i32
    return %c0_i32, %arg0 : i32, i32
  }
}

</mosaic_0001>

<llo_original>
// kernel: mlp_forward.1
$region0: #{mlp_forward.1}
  #allocation0 [shape = 'u32[]', space=smem, size = 0x4, offset = 0x4, fixed_abs, tag = 'smem constant byte address 0x4 - core index']
  #allocation1 [shape = 'u32[72,128]{1,0:T(1,128)}', space=vmem, size = 0x9000, scoped, tag = 'internal scratch']
  #allocation2 [shape = 'f32[1,1]{1,0:T(1,128)S(1)}', space=vmem, size = 0x200, scoped, tag = 'scoped memory for mlp_forward.1']
  %s0 = inlined_call_operand.vmem [shape: f32[128,8], index: 0, kind: input, shape index: {}]
  %s1 = inlined_call_operand.vmem [shape: f32[64,8], index: 1, kind: input, shape index: {}]
  %s2 = inlined_call_operand.vmem [shape: f32[64,1], index: 2, kind: input, shape index: {}]
  %s3 = inlined_call_operand.vmem [shape: f32[16,64], index: 3, kind: input, shape index: {}]
  %s4 = inlined_call_operand.vmem [shape: f32[16,1], index: 4, kind: input, shape index: {}]
  %s5 = inlined_call_operand.vmem [shape: f32[1,16], index: 5, kind: input, shape index: {}]
  %s6 = inlined_call_operand.<no memory space> [shape: f32[1,1], index: 6, kind: input, shape index: {}]
  %s7 = inlined_call_operand.vmem [shape: f32[1,128], index: 7, kind: output, shape index: {}]
  %s8 = sld [smem:[#allocation0]]
  $region38: #{mlp_forward.1} parent=0
    _
  %s10 = ssub.s32 1, %s8
  %s11 = scalar_select 0, %s10, %s8
  %v12 = vstv %s6
  %13 = vst [vmem:[#allocation2] sm:$0x1] %v12
  // Predicated region
  $region2: #{mlp_forward.1} parent=0 // pred_check
    _
  $region3: #{mlp_forward.1} parent=0 // pred_check_branch
    %15 = sbr.rel (0) target = $region5
  $region4: #{mlp_forward.1} parent=0 // pred_region
    _
  $region5: #{mlp_forward.1} parent=0 // pred_fallthru
    _
  // Predicated region
  $region6: #{mlp_forward.1} parent=0 // pred_check
    _
  $region7: #{mlp_forward.1} parent=0 // pred_check_branch
    %17 = sbr.rel (0) target = $region9
  $region8: #{mlp_forward.1} parent=0 // pred_region
    _
  $region9: #{mlp_forward.1} parent=0 // pred_fallthru
    _
  // Predicated region
  $region10: #{mlp_forward.1} parent=0 // pred_check
    _
  $region11: #{mlp_forward.1} parent=0 // pred_check_branch
    %19 = sbr.rel (0) target = $region13
  $region12: #{mlp_forward.1} parent=0 // pred_region
    _
  $region13: #{mlp_forward.1} parent=0 // pred_fallthru
    _
  // Predicated region
  $region14: #{mlp_forward.1} parent=0 // pred_check
    _
  $region15: #{mlp_forward.1} parent=0 // pred_check_branch
    %21 = sbr.rel (0) target = $region17
  $region16: #{mlp_forward.1} parent=0 // pred_region
    _
  $region17: #{mlp_forward.1} parent=0 // pred_fallthru
    _
  // Predicated region
  $region18: #{mlp_forward.1} parent=0 // pred_check
    _
  $region19: #{mlp_forward.1} parent=0 // pred_check_branch
    %23 = sbr.rel (0) target = $region21
  $region20: #{mlp_forward.1} parent=0 // pred_region
    _
  $region21: #{mlp_forward.1} parent=0 // pred_fallthru
    _
  // Predicated region
  $region22: #{mlp_forward.1} parent=0 // pred_check
    _
  $region23: #{mlp_forward.1} parent=0 // pred_check_branch
    %25 = sbr.rel (0) target = $region25
  $region24: #{mlp_forward.1} parent=0 // pred_region
    _
  $region25: #{mlp_forward.1} parent=0 // pred_fallthru
    _
  // Predicated region
  $region26: #{mlp_forward.1} parent=0 // pred_check
    _
  $region27: #{mlp_forward.1} parent=0 // pred_check_branch
    %27 = sbr.rel (0) target = $region29
  $region28: #{mlp_forward.1} parent=0 // pred_region
    _
  $region29: #{mlp_forward.1} parent=0 // pred_fallthru
    _
  %v28 = vld [vmem:[%s1] sm:$0xff]
  %v29 = vld [vmem:[%s1 + $0x8] sm:$0xff]
  %v30 = vld [vmem:[%s1 + $0x10] sm:$0xff]
  %v31 = vld [vmem:[%s1 + $0x18] sm:$0xff]
  %v32 = vld [vmem:[%s1 + $0x20] sm:$0xff]
  %v33 = vld [vmem:[%s1 + $0x28] sm:$0xff]
  %v34 = vld [vmem:[%s1 + $0x30] sm:$0xff]
  %v35 = vld [vmem:[%s1 + $0x38] sm:$0xff]
  %v36 = vld [vmem:[%s0] sm:$0xff]
  %v37 = vld [vmem:[%s0 + $0x8] sm:$0xff]
  %v38 = vld [vmem:[%s0 + $0x10] sm:$0xff]
  %v39 = vld [vmem:[%s0 + $0x18] sm:$0xff]
  %v40 = vld [vmem:[%s0 + $0x20] sm:$0xff]
  %v41 = vld [vmem:[%s0 + $0x28] sm:$0xff]
  %v42 = vld [vmem:[%s0 + $0x30] sm:$0xff]
  %v43 = vld [vmem:[%s0 + $0x38] sm:$0xff]
  %v44 = vld [vmem:[%s0 + $0x40] sm:$0xff]
  %v45 = vld [vmem:[%s0 + $0x48] sm:$0xff]
  %v46 = vld [vmem:[%s0 + $0x50] sm:$0xff]
  %v47 = vld [vmem:[%s0 + $0x58] sm:$0xff]
  %v48 = vld [vmem:[%s0 + $0x60] sm:$0xff]
  %v49 = vld [vmem:[%s0 + $0x68] sm:$0xff]
  %v50 = vld [vmem:[%s0 + $0x70] sm:$0xff]
  %v51 = vld [vmem:[%s0 + $0x78] sm:$0xff]
  %v52 = vld [vmem:[%s2] sm:$0xff]
  %v53 = vld [vmem:[%s2 + $0x8] sm:$0xff]
  %v54 = vld [vmem:[%s2 + $0x10] sm:$0xff]
  %v55 = vld [vmem:[%s2 + $0x18] sm:$0xff]
  %v56 = vld [vmem:[%s2 + $0x20] sm:$0xff]
  %v57 = vld [vmem:[%s2 + $0x28] sm:$0xff]
  %v58 = vld [vmem:[%s2 + $0x30] sm:$0xff]
  %v59 = vld [vmem:[%s2 + $0x38] sm:$0xff]
  %61 = vset.pattern.permute.xlu0 0
  %62 = vperm.xlu0 %61, %v52
  %v63 = vpop.permute.xlu0 %62
  %66 = vset.pattern.permute.xlu0 0
  %67 = vperm.xlu0 %66, %v53
  %v68 = vpop.permute.xlu0 %67
  %71 = vset.pattern.permute.xlu0 0
  %72 = vperm.xlu0 %71, %v54
  %v73 = vpop.permute.xlu0 %72
  %76 = vset.pattern.permute.xlu0 0
  %77 = vperm.xlu0 %76, %v55
  %v78 = vpop.permute.xlu0 %77
  %81 = vset.pattern.permute.xlu0 0
  %82 = vperm.xlu0 %81, %v56
  %v83 = vpop.permute.xlu0 %82
  %86 = vset.pattern.permute.xlu0 0
  %87 = vperm.xlu0 %86, %v57
  %v88 = vpop.permute.xlu0 %87
  %91 = vset.pattern.permute.xlu0 0
  %92 = vperm.xlu0 %91, %v58
  %v93 = vpop.permute.xlu0 %92
  %96 = vset.pattern.permute.xlu0 0
  %97 = vperm.xlu0 %96, %v59
  %v98 = vpop.permute.xlu0 %97
  %vm100 = vcmask 64512
  %v102 = vsel %vm100, %v28, 0
  %v105 = vsel %vm100, %v29, 0
  %v108 = vsel %vm100, %v30, 0
  %v111 = vsel %vm100, %v31, 0
  %v114 = vsel %vm100, %v32, 0
  %v117 = vsel %vm100, %v33, 0
  %v120 = vsel %vm100, %v34, 0
  %v123 = vsel %vm100, %v35, 0
  %v126 = vsel %vm100, %v36, 0
  %v129 = vsel %vm100, %v37, 0
  %v132 = vsel %vm100, %v38, 0
  %v135 = vsel %vm100, %v39, 0
  %v138 = vsel %vm100, %v40, 0
  %v141 = vsel %vm100, %v41, 0
  %v144 = vsel %vm100, %v42, 0
  %v147 = vsel %vm100, %v43, 0
  %v150 = vsel %vm100, %v44, 0
  %v153 = vsel %vm100, %v45, 0
  %v156 = vsel %vm100, %v46, 0
  %v159 = vsel %vm100, %v47, 0
  %v162 = vsel %vm100, %v48, 0
  %v165 = vsel %vm100, %v49, 0
  %v168 = vsel %vm100, %v50, 0
  %v171 = vsel %vm100, %v51, 0
  %173 = vmatpush.xpose.msra.mxu0 %v171
  %174 = vmatpush.xpose.msra.mxu0 %v168
  %175 = vmatpush.xpose.msra.mxu0 %v165
  %176 = vmatpush.xpose.msra.mxu0 %v162
  %177 = vmatpush.xpose.msra.mxu0 %v159
  %178 = vmatpush.xpose.msra.mxu0 %v156
  %179 = vmatpush.xpose.msra.mxu0 %v153
  %180 = vmatpush.xpose.msra.mxu0 %v150
  %181 = vmatpush.xpose.msra.mxu0 %v147
  %182 = vmatpush.xpose.msra.mxu0 %v144
  %183 = vmatpush.xpose.msra.mxu0 %v141
  %184 = vmatpush.xpose.msra.mxu0 %v138
  %185 = vmatpush.xpose.msra.mxu0 %v135
  %186 = vmatpush.xpose.msra.mxu0 %v132
  %187 = vmatpush.xpose.msra.mxu0 %v129
  %188 = vmatpush.xpose.msra.mxu0 %v126
  %189 = vmatmul.f32.gmra.mxu0 %v102
  %v190 = vpop.f32.mrf.mxu0
  %v191 = vadd.f32 %v63, %v190
  %192 = vmatmul.f32.gmra.mxu0 %v105
  %v193 = vpop.f32.mrf.mxu0
  %v194 = vadd.f32 %v68, %v193
  %195 = vmatmul.f32.gmra.mxu0 %v108
  %v196 = vpop.f32.mrf.mxu0
  %v197 = vadd.f32 %v73, %v196
  %198 = vmatmul.f32.gmra.mxu0 %v111
  %v199 = vpop.f32.mrf.mxu0
  %v200 = vadd.f32 %v78, %v199
  %201 = vmatmul.f32.gmra.mxu0 %v114
  %v202 = vpop.f32.mrf.mxu0
  %v203 = vadd.f32 %v83, %v202
  %204 = vmatmul.f32.gmra.mxu0 %v117
  %v205 = vpop.f32.mrf.mxu0
  %v206 = vadd.f32 %v88, %v205
  %207 = vmatmul.f32.gmra.mxu0 %v120
  %v208 = vpop.f32.mrf.mxu0
  %v209 = vadd.f32 %v93, %v208
  %210 = vmatmul.f32.gmra.mxu0 %v123
  %v211 = vpop.f32.mrf.mxu0
  %v212 = vadd.f32 %v98, %v211
  %213 = vdwg.mxu0
  %v214 = vtanh.pop %v191
  %v215 = vtanh.pop %v194
  %v216 = vtanh.pop %v197
  %v217 = vtanh.pop %v200
  %v218 = vtanh.pop %v203
  %v219 = vtanh.pop %v206
  %v220 = vtanh.pop %v209
  %v221 = vtanh.pop %v212
  %v222 = vld [vmem:[%s3] sm:$0xff]
  %v223 = vld [vmem:[%s3 + $0x8] sm:$0xff]
  %v224 = vld [vmem:[%s4] sm:$0xff]
  %v225 = vld [vmem:[%s4 + $0x8] sm:$0xff]
  %227 = vset.pattern.permute.xlu0 0
  %228 = vperm.xlu0 %227, %v224
  %v229 = vpop.permute.xlu0 %228
  %232 = vset.pattern.permute.xlu0 0
  %233 = vperm.xlu0 %232, %v225
  %v234 = vpop.permute.xlu0 %233
  %vm236 = vcmask 523264
  %v238 = vsel %vm236, %v222, 0
  %v241 = vsel %vm236, %v223, 0
  %243 = vmatpush.msra.mxu0 0.0
  %244 = vmatpush.msra.mxu0 0.0
  %245 = vmatpush.msra.mxu0 0.0
  %246 = vmatpush.msra.mxu0 0.0
  %247 = vmatpush.msra.mxu0 0.0
  %248 = vmatpush.msra.mxu0 0.0
  %249 = vmatpush.msra.mxu0 0.0
  %250 = vmatpush.msra.mxu0 0.0
  %251 = vmatpush.msra.mxu0 %v221
  %252 = vmatpush.msra.mxu0 %v220
  %253 = vmatpush.msra.mxu0 %v219
  %254 = vmatpush.msra.mxu0 %v218
  %255 = vmatpush.msra.mxu0 %v217
  %256 = vmatpush.msra.mxu0 %v216
  %257 = vmatpush.msra.mxu0 %v215
  %258 = vmatpush.msra.mxu0 %v214
  %259 = vmatmul.f32.gmra.mxu0 %v238
  %v260 = vpop.f32.mrf.mxu0
  %v261 = vadd.f32 %v229, %v260
  %262 = vmatmul.f32.gmra.mxu0 %v241
  %v263 = vpop.f32.mrf.mxu0
  %v264 = vadd.f32 %v234, %v263
  %265 = vdwg.mxu0
  %v266 = vtanh.pop %v261
  %v267 = vtanh.pop %v264
  %v268 = vld [vmem:[%s5] sm:$0x1]
  %v269 = vld [vmem:[#allocation2] sm:$0x1]
  %271 = vset.pattern.permute.xlu0 0
  %272 = vperm.xlu0 %271, %v269
  %v273 = vpop.permute.xlu0 %272
  %v275 = vperm.slane %v273, 0
  %vm276 = vcmask 130048
  %v278 = vsel %vm276, %v268, 0
  %280 = vmatpush.msra.mxu0 0.0
  %281 = vmatpush.msra.mxu0 0.0
  %282 = vmatpush.msra.mxu0 0.0
  %283 = vmatpush.msra.mxu0 0.0
  %284 = vmatpush.msra.mxu0 0.0
  %285 = vmatpush.msra.mxu0 0.0
  %286 = vmatpush.msra.mxu0 0.0
  %287 = vmatpush.msra.mxu0 0.0
  %288 = vmatpush.msra.mxu0 0.0
  %289 = vmatpush.msra.mxu0 0.0
  %290 = vmatpush.msra.mxu0 0.0
  %291 = vmatpush.msra.mxu0 0.0
  %292 = vmatpush.msra.mxu0 0.0
  %293 = vmatpush.msra.mxu0 0.0
  %294 = vmatpush.msra.mxu0 %v267
  %295 = vmatpush.msra.mxu0 %v266
  %296 = vmatmul.f32.gmra.mxu0 %v278
  %v297 = vpop.f32.mrf.mxu0
  %v298 = vadd.f32 %v275, %v297
  %299 = vdwg.mxu0
  %v300 = vtanh.pop %v298
  %v301 = vmul.f32 %v300, 0.5
  %v302 = vadd.f32 %v301, 0.5
  %303 = vst [vmem:[%s7] sm:$0x1] %v302
  // Predicated region
  $region30: #{mlp_forward.1} parent=0 // pred_check
    _
  $region31: #{mlp_forward.1} parent=0 // pred_check_branch
    %305 = sbr.rel (0) target = $region33
  $region32: #{mlp_forward.1} parent=0 // pred_region
    _
  $region33: #{mlp_forward.1} parent=0 // pred_fallthru
    _
  // Predicated region
  $region34: #{mlp_forward.1} parent=0 // pred_check
    _
  $region35: #{mlp_forward.1} parent=0 // pred_check_branch
    %307 = sbr.rel (0) target = $region37
  $region36: #{mlp_forward.1} parent=0 // pred_region
    _
  $region37: #{mlp_forward.1} parent=0 // pred_fallthru
    _

</llo_original>
